<compile_context>
chip_gen: v5e
topology: v5e:2x2
jax: 0.10.0
libtpu: 0.0.40
codegen_flags: <defaults>
</compile_context>

<pallas_src>
import math

import jax
import jax.numpy as jnp
from jax.experimental import pallas as pl
from jax.experimental.pallas import tpu as pltpu

# ---- problem sizes (consistent with the module) ------------------------------
B = 2            # batch
LQ = 8           # query length
LK = 8           # key/value length
D_MODEL = 32     # d_model
HEAD_NUM = 4     # head_num
D_HEAD = D_MODEL // HEAD_NUM
DROPOUT_P = 0.1  # eval mode -> identity

N_Q = B * LQ         # 16 flattened query rows
N_K = B * LK         # 16 flattened key/value rows
PAD = 128            # lane-dense output width of both fused projections
W_PAD = 40           # weight-slab rows: 32 weight rows + 1 bias row, padded to 8x

_SCALE = 1.0 / math.sqrt(D_MODEL / HEAD_NUM)
_NEG = jnp.float32(-1e30)    # finite "minus infinity"; keep bias/softmax in f32

# Constant: cross-batch score positions (row r belongs to batch r//LQ, col c to c//LK).
_CROSS_BATCH = (jnp.arange(N_Q)[:, None] // LQ) != (jnp.arange(N_K)[None, :] // LK)


def _mha_kernel(q_ref, kv_ref, bias_ref, w_ref, out_ref):
    """Single-invocation fused MHA forward.

    q_ref   : (N_Q, D_MODEL)   flattened query rows.
    kv_ref  : (N_K, D_MODEL)   flattened key/value rows.
    bias_ref: (N_Q, N_K)       additive mask bias (-1e30 on masked / cross-batch).
    w_ref   : (2, W_PAD, PAD)  [0] fused QKV projection: rows 0:32 = [Wq*scale|Wk|Wv],
                                   row 32 = [bq*scale|bk|bv];
                               [1] output projection:  rows 0:32 = Wo (lanes 0:32),
                                   row 32 = bo.
    out_ref : (N_Q, PAD)       lane-dense output slab (first 32 lanes meaningful).
    """
    w_in = w_ref[0]                                    # (W_PAD, 128)
    w_out = w_ref[1]                                   # (W_PAD, 128)
    w_proj = w_in[0:D_MODEL, :]                        # (32, 128)
    b_proj = w_in[D_MODEL:D_MODEL + 1, :]              # (1, 128) fused [bq*s|bk|bv]

    # Two small MXU passes: Q projection of the query rows, K/V projection of
    # the key/value rows (unused lanes of each are simply never read).
    proj_q = jnp.dot(q_ref[...], w_proj,
                     preferred_element_type=jnp.float32) + b_proj     # (N_Q, 128)
    proj_kv = jnp.dot(kv_ref[...], w_proj,
                      preferred_element_type=jnp.float32) + b_proj    # (N_K, 128)

    bias = bias_ref[...]                               # (N_Q, N_K)

    # Output accumulator starts at the broadcast output bias row (bo).
    acc = jnp.broadcast_to(w_out[D_MODEL:D_MODEL + 1, :], (N_Q, PAD))

    dn = (((1,), (1,)), ((), ()))                      # contract last dims, no batch
    for h in range(HEAD_NUM):                          # static unroll over heads
        lo = h * D_HEAD
        qh = proj_q[:, lo:lo + D_HEAD]                                  # (N_Q, dh)
        kh = proj_kv[:, D_MODEL + lo:D_MODEL + lo + D_HEAD]            # (N_K, dh)
        vh = proj_kv[:, 2 * D_MODEL + lo:2 * D_MODEL + lo + D_HEAD]    # (N_K, dh)

        # Both batch elements at once; cross-batch scores carry the -1e30 bias,
        # so exp() underflows to exactly 0 and the softmax matches per-batch
        # attention (softmax scale already folded into Wq / bq).
        s = jax.lax.dot_general(qh, kh, dn,
                                preferred_element_type=jnp.float32) + bias
        m = jnp.max(s, axis=-1, keepdims=True)
        e = jnp.exp(s - m)
        d = jnp.sum(e, axis=-1, keepdims=True)
        r = pl.reciprocal(d, approx=True)
        r = r * (2.0 - d * r)                          # one Newton step -> ~f32 exact
        ctx_h = jnp.dot(e * r, vh, preferred_element_type=jnp.float32)  # (N_Q, dh)

        # Fold this head straight into the output projection (register accumulate).
        acc = acc + jnp.dot(ctx_h, w_out[lo:lo + D_HEAD, :],
                            preferred_element_type=jnp.float32)

    out_ref[...] = acc                                 # single lane-dense (16,128) vst


def prepare_mha_weights(params):
    """Build the fused + padded weight slab ONCE per parameter set."""
    wq, bq, wk, bk, wv, bv, wo, bo = params
    w = jnp.zeros((2, W_PAD, PAD), jnp.float32)
    # [0] fused QKV projection, softmax scale pre-folded into Wq / bq.
    w = w.at[0, :D_MODEL, 0:D_MODEL].set(wq * _SCALE)
    w = w.at[0, :D_MODEL, D_MODEL:2 * D_MODEL].set(wk)
    w = w.at[0, :D_MODEL, 2 * D_MODEL:3 * D_MODEL].set(wv)
    w = w.at[0, D_MODEL, 0:D_MODEL].set(bq * _SCALE)
    w = w.at[0, D_MODEL, D_MODEL:2 * D_MODEL].set(bk)
    w = w.at[0, D_MODEL, 2 * D_MODEL:3 * D_MODEL].set(bv)
    # [1] output projection (bias in row 32; only first 32 output lanes used).
    w = w.at[1, :D_MODEL, :D_MODEL].set(wo)
    w = w.at[1, D_MODEL, :D_MODEL].set(bo)
    return w


@jax.jit
def multi_head_attention(Q, K_V, mask, w_stack):
    """Q: (B,LQ,D), K_V: (B,LK,D), mask: (B,LQ,LK) bool, w_stack: (2,W_PAD,PAD)."""
    # Free row-major reshapes (no data movement).
    q2 = Q.reshape(N_Q, D_MODEL).astype(jnp.float32)
    kv2 = K_V.reshape(N_K, D_MODEL).astype(jnp.float32)

    # Additive mask bias: one fused elementwise where() per call (block-diagonal
    # across batch; cross-batch positions and masked keys both get -1e30).
    mask16 = jnp.tile(mask.reshape(N_Q, LK), (1, B))            # (N_Q, N_K)
    bias = jnp.where(jnp.logical_or(_CROSS_BATCH, mask16), _NEG, jnp.float32(0.0))

    vmem = pltpu.MemorySpace.VMEM
    out_pad = pl.pallas_call(
        _mha_kernel,
        out_shape=jax.ShapeDtypeStruct((N_Q, PAD), jnp.float32),
        in_specs=[
            pl.BlockSpec(memory_space=vmem),   # q rows        (16, 32)
            pl.BlockSpec(memory_space=vmem),   # k/v rows      (16, 32)
            pl.BlockSpec(memory_space=vmem),   # mask bias     (16, 16)
            pl.BlockSpec(memory_space=vmem),   # weight slab   (2, 40, 128)
        ],
        out_specs=pl.BlockSpec(memory_space=vmem),
    )(q2, kv2, bias, w_stack)

    return out_pad[:, :D_MODEL].reshape(B, LQ, D_MODEL)


def _reference(Q, K_V, mask, params):
    """Pure-JAX replica of the PyTorch forward (eval mode)."""
    wq, bq, wk, bk, wv, bv, wo, bo = params
    q = Q @ wq + bq
    k = K_V @ wk + bk
    v = K_V @ wv + bv
    # chunk(dim=2) + cat(dim=0) == per-head attention with head-major batching
    qh = jnp.concatenate(jnp.split(q, HEAD_NUM, axis=2), axis=0)
    kh = jnp.concatenate(jnp.split(k, HEAD_NUM, axis=2), axis=0)
    vh = jnp.concatenate(jnp.split(v, HEAD_NUM, axis=2), axis=0)
    s = jnp.einsum("bqd,bkd->bqk", qh, kh) / math.sqrt(D_MODEL / HEAD_NUM)
    masks = jnp.tile(mask, (HEAD_NUM, 1, 1))
    s = jnp.where(masks, -jnp.inf, s)
    p = jax.nn.softmax(s, axis=2)
    ctx = jnp.einsum("bqk,bkd->bqd", p, vh)
    ctx = jnp.concatenate(jnp.split(ctx, HEAD_NUM, axis=0), axis=2)
    return ctx @ wo + bo


def _init_params(key):
    ks = jax.random.split(key, 8)
    init = lambda k, shape: (jax.random.normal(k, shape, jnp.float32)
                             / math.sqrt(shape[0] if len(shape) == 2 else 1.0))
    wq = init(ks[0], (D_MODEL, D_MODEL)); bq = 0.01 * jax.random.normal(ks[1], (D_MODEL,))
    wk = init(ks[2], (D_MODEL, D_MODEL)); bk = 0.01 * jax.random.normal(ks[3], (D_MODEL,))
    wv = init(ks[4], (D_MODEL, D_MODEL)); bv = 0.01 * jax.random.normal(ks[5], (D_MODEL,))
    wo = init(ks[6], (D_MODEL, D_MODEL)); bo = 0.01 * jax.random.normal(ks[7], (D_MODEL,))
    return (wq, bq, wk, bk, wv, bv, wo, bo)


if __name__ == "__main__":
    key = jax.random.PRNGKey(0)
    k_p, k_q, k_kv, k_m = jax.random.split(key, 4)

    params = _init_params(k_p)
    Q = jax.random.normal(k_q, (B, LQ, D_MODEL), jnp.float32)
    K_V = jax.random.normal(k_kv, (B, LK, D_MODEL), jnp.float32)
    # boolean mask; guarantee at least one unmasked key per query row
    mask = jax.random.uniform(k_m, (B, LQ, LK)) < 0.3
    mask = mask.at[:, :, 0].set(False)

    # Built once per parameter set (hoisted out of the per-call path).
    w_stack = jax.block_until_ready(prepare_mha_weights(params))

    out = jax.block_until_ready(multi_head_attention(Q, K_V, mask, w_stack))
    ref = _reference(Q, K_V, mask, params)

    assert out.shape == (B, LQ, D_MODEL)
    # Remaining differences come from MXU vs XLA f32 matmul accumulation order /
    # default matmul precision in the reference; well within 1e-2.
    assert bool(jnp.allclose(out, ref, atol=1e-2, rtol=1e-2)), "mismatch vs reference"

    print("KERNEL_OK")
</pallas_src>

<mosaic_0001>
module attributes {stable_mosaic.version = 11 : i64} {
  func.func @_mha_kernel(%arg0: memref<16x32xf32, #tpu.memory_space<vmem>>, %arg1: memref<16x32xf32, #tpu.memory_space<vmem>>, %arg2: memref<16x16xf32, #tpu.memory_space<vmem>>, %arg3: memref<2x40x128xf32, #tpu.memory_space<vmem>>, %arg4: memref<16x128xf32, #tpu.memory_space<vmem>>) attributes {dimension_semantics = [], scalar_prefetch = 0 : i64, scratch_operands = 0 : i64, tpu.core_type = #tpu.core_type<tc>} {
    %c0 = arith.constant 0 : index
    %c0_0 = arith.constant 0 : index
    %c0_1 = arith.constant 0 : index
    %0 = vector.load %arg3[%c0, %c0_0, %c0_1] : memref<2x40x128xf32, #tpu.memory_space<vmem>>, vector<1x40x128xf32>
    %1 = vector.shape_cast %0 : vector<1x40x128xf32> to vector<40x128xf32>
    %c1 = arith.constant 1 : index
    %c0_2 = arith.constant 0 : index
    %c0_3 = arith.constant 0 : index
    %2 = vector.load %arg3[%c1, %c0_2, %c0_3] : memref<2x40x128xf32, #tpu.memory_space<vmem>>, vector<1x40x128xf32>
    %3 = vector.shape_cast %2 : vector<1x40x128xf32> to vector<40x128xf32>
    %4 = vector.extract_strided_slice %1 {offsets = [0, 0], sizes = [32, 128], strides = [1, 1]} : vector<40x128xf32> to vector<32x128xf32>
    %5 = vector.extract_strided_slice %1 {offsets = [32, 0], sizes = [1, 128], strides = [1, 1]} : vector<40x128xf32> to vector<1x128xf32>
    %c0_4 = arith.constant 0 : index
    %c0_5 = arith.constant 0 : index
    %6 = vector.load %arg0[%c0_4, %c0_5] : memref<16x32xf32, #tpu.memory_space<vmem>>, vector<16x32xf32>
    %cst = arith.constant dense<0.000000e+00> : vector<16x128xf32>
    %7 = tpu.matmul %6, %4, %cst {dimension_numbers = #tpu.dot_dimension_numbers<[1], [0], [0], [1], [0, 0, 1, 1], [], []>} : vector<16x32xf32>, vector<32x128xf32>, vector<16x128xf32> -> vector<16x128xf32>
    %8 = vector.broadcast %5 : vector<1x128xf32> to vector<16x128xf32>
    %9 = arith.addf %7, %8 : vector<16x128xf32>
    %c0_6 = arith.constant 0 : index
    %c0_7 = arith.constant 0 : index
    %10 = vector.load %arg1[%c0_6, %c0_7] : memref<16x32xf32, #tpu.memory_space<vmem>>, vector<16x32xf32>
    %cst_8 = arith.constant dense<0.000000e+00> : vector<16x128xf32>
    %11 = tpu.matmul %10, %4, %cst_8 {dimension_numbers = #tpu.dot_dimension_numbers<[1], [0], [0], [1], [0, 0, 1, 1], [], []>} : vector<16x32xf32>, vector<32x128xf32>, vector<16x128xf32> -> vector<16x128xf32>
    %12 = vector.broadcast %5 : vector<1x128xf32> to vector<16x128xf32>
    %13 = arith.addf %11, %12 : vector<16x128xf32>
    %c0_9 = arith.constant 0 : index
    %c0_10 = arith.constant 0 : index
    %14 = vector.load %arg2[%c0_9, %c0_10] : memref<16x16xf32, #tpu.memory_space<vmem>>, vector<16x16xf32>
    %15 = vector.extract_strided_slice %3 {offsets = [32, 0], sizes = [1, 128], strides = [1, 1]} : vector<40x128xf32> to vector<1x128xf32>
    %16 = vector.shape_cast %15 : vector<1x128xf32> to vector<1x128xf32>
    %17 = vector.broadcast %16 : vector<1x128xf32> to vector<16x128xf32>
    %18 = vector.extract_strided_slice %9 {offsets = [0, 0], sizes = [16, 8], strides = [1, 1]} : vector<16x128xf32> to vector<16x8xf32>
    %19 = vector.extract_strided_slice %13 {offsets = [0, 32], sizes = [16, 8], strides = [1, 1]} : vector<16x128xf32> to vector<16x8xf32>
    %20 = vector.extract_strided_slice %13 {offsets = [0, 64], sizes = [16, 8], strides = [1, 1]} : vector<16x128xf32> to vector<16x8xf32>
    %cst_11 = arith.constant dense<0.000000e+00> : vector<16x16xf32>
    %21 = tpu.matmul %18, %19, %cst_11 {dimension_numbers = #tpu.dot_dimension_numbers<[1], [1], [0], [0], [0, 0, 1, 0], [], []>} : vector<16x8xf32>, vector<16x8xf32>, vector<16x16xf32> -> vector<16x16xf32>
    %22 = arith.addf %21, %14 : vector<16x16xf32>
    %cst_12 = arith.constant dense<0xFF800000> : vector<16xf32>
    %23 = vector.multi_reduction <maximumf>, %22, %cst_12 [1] : vector<16x16xf32> to vector<16xf32>
    %24 = vector.shape_cast %23 : vector<16xf32> to vector<16x1xf32>
    %25 = vector.broadcast %24 : vector<16x1xf32> to vector<16x16xf32>
    %26 = arith.subf %22, %25 : vector<16x16xf32>
    %27 = math.exp %26 : vector<16x16xf32>
    %cst_13 = arith.constant dense<0.000000e+00> : vector<16xf32>
    %28 = vector.multi_reduction <add>, %27, %cst_13 [1] : vector<16x16xf32> to vector<16xf32>
    %29 = vector.shape_cast %28 : vector<16xf32> to vector<16x1xf32>
    %30 = tpu.reciprocal %29 {approx = true} : vector<16x1xf32> -> vector<16x1xf32>
    %31 = arith.mulf %29, %30 : vector<16x1xf32>
    %cst_14 = arith.constant 2.000000e+00 : f32
    %32 = vector.broadcast %cst_14 : f32 to vector<16x1xf32>
    %33 = arith.subf %32, %31 : vector<16x1xf32>
    %34 = arith.mulf %30, %33 : vector<16x1xf32>
    %35 = vector.broadcast %34 : vector<16x1xf32> to vector<16x16xf32>
    %36 = arith.mulf %27, %35 : vector<16x16xf32>
    %cst_15 = arith.constant dense<0.000000e+00> : vector<16x8xf32>
    %37 = tpu.matmul %36, %20, %cst_15 {dimension_numbers = #tpu.dot_dimension_numbers<[1], [0], [0], [1], [0, 0, 1, 1], [], []>} : vector<16x16xf32>, vector<16x8xf32>, vector<16x8xf32> -> vector<16x8xf32>
    %38 = vector.extract_strided_slice %3 {offsets = [0, 0], sizes = [8, 128], strides = [1, 1]} : vector<40x128xf32> to vector<8x128xf32>
    %cst_16 = arith.constant dense<0.000000e+00> : vector<16x128xf32>
    %39 = tpu.matmul %37, %38, %cst_16 {dimension_numbers = #tpu.dot_dimension_numbers<[1], [0], [0], [1], [0, 0, 1, 1], [], []>} : vector<16x8xf32>, vector<8x128xf32>, vector<16x128xf32> -> vector<16x128xf32>
    %40 = arith.addf %17, %39 : vector<16x128xf32>
    %41 = vector.extract_strided_slice %9 {offsets = [0, 8], sizes = [16, 8], strides = [1, 1]} : vector<16x128xf32> to vector<16x8xf32>
    %42 = vector.extract_strided_slice %13 {offsets = [0, 40], sizes = [16, 8], strides = [1, 1]} : vector<16x128xf32> to vector<16x8xf32>
    %43 = vector.extract_strided_slice %13 {offsets = [0, 72], sizes = [16, 8], strides = [1, 1]} : vector<16x128xf32> to vector<16x8xf32>
    %cst_17 = arith.constant dense<0.000000e+00> : vector<16x16xf32>
    %44 = tpu.matmul %41, %42, %cst_17 {dimension_numbers = #tpu.dot_dimension_numbers<[1], [1], [0], [0], [0, 0, 1, 0], [], []>} : vector<16x8xf32>, vector<16x8xf32>, vector<16x16xf32> -> vector<16x16xf32>
    %45 = arith.addf %44, %14 : vector<16x16xf32>
    %cst_18 = arith.constant dense<0xFF800000> : vector<16xf32>
    %46 = vector.multi_reduction <maximumf>, %45, %cst_18 [1] : vector<16x16xf32> to vector<16xf32>
    %47 = vector.shape_cast %46 : vector<16xf32> to vector<16x1xf32>
    %48 = vector.broadcast %47 : vector<16x1xf32> to vector<16x16xf32>
    %49 = arith.subf %45, %48 : vector<16x16xf32>
    %50 = math.exp %49 : vector<16x16xf32>
    %cst_19 = arith.constant dense<0.000000e+00> : vector<16xf32>
    %51 = vector.multi_reduction <add>, %50, %cst_19 [1] : vector<16x16xf32> to vector<16xf32>
    %52 = vector.shape_cast %51 : vector<16xf32> to vector<16x1xf32>
    %53 = tpu.reciprocal %52 {approx = true} : vector<16x1xf32> -> vector<16x1xf32>
    %54 = arith.mulf %52, %53 : vector<16x1xf32>
    %cst_20 = arith.constant 2.000000e+00 : f32
    %55 = vector.broadcast %cst_20 : f32 to vector<16x1xf32>
    %56 = arith.subf %55, %54 : vector<16x1xf32>
    %57 = arith.mulf %53, %56 : vector<16x1xf32>
    %58 = vector.broadcast %57 : vector<16x1xf32> to vector<16x16xf32>
    %59 = arith.mulf %50, %58 : vector<16x16xf32>
    %cst_21 = arith.constant dense<0.000000e+00> : vector<16x8xf32>
    %60 = tpu.matmul %59, %43, %cst_21 {dimension_numbers = #tpu.dot_dimension_numbers<[1], [0], [0], [1], [0, 0, 1, 1], [], []>} : vector<16x16xf32>, vector<16x8xf32>, vector<16x8xf32> -> vector<16x8xf32>
    %61 = vector.extract_strided_slice %3 {offsets = [8, 0], sizes = [8, 128], strides = [1, 1]} : vector<40x128xf32> to vector<8x128xf32>
    %cst_22 = arith.constant dense<0.000000e+00> : vector<16x128xf32>
    %62 = tpu.matmul %60, %61, %cst_22 {dimension_numbers = #tpu.dot_dimension_numbers<[1], [0], [0], [1], [0, 0, 1, 1], [], []>} : vector<16x8xf32>, vector<8x128xf32>, vector<16x128xf32> -> vector<16x128xf32>
    %63 = arith.addf %40, %62 : vector<16x128xf32>
    %64 = vector.extract_strided_slice %9 {offsets = [0, 16], sizes = [16, 8], strides = [1, 1]} : vector<16x128xf32> to vector<16x8xf32>
    %65 = vector.extract_strided_slice %13 {offsets = [0, 48], sizes = [16, 8], strides = [1, 1]} : vector<16x128xf32> to vector<16x8xf32>
    %66 = vector.extract_strided_slice %13 {offsets = [0, 80], sizes = [16, 8], strides = [1, 1]} : vector<16x128xf32> to vector<16x8xf32>
    %cst_23 = arith.constant dense<0.000000e+00> : vector<16x16xf32>
    %67 = tpu.matmul %64, %65, %cst_23 {dimension_numbers = #tpu.dot_dimension_numbers<[1], [1], [0], [0], [0, 0, 1, 0], [], []>} : vector<16x8xf32>, vector<16x8xf32>, vector<16x16xf32> -> vector<16x16xf32>
    %68 = arith.addf %67, %14 : vector<16x16xf32>
    %cst_24 = arith.constant dense<0xFF800000> : vector<16xf32>
    %69 = vector.multi_reduction <maximumf>, %68, %cst_24 [1] : vector<16x16xf32> to vector<16xf32>
    %70 = vector.shape_cast %69 : vector<16xf32> to vector<16x1xf32>
    %71 = vector.broadcast %70 : vector<16x1xf32> to vector<16x16xf32>
    %72 = arith.subf %68, %71 : vector<16x16xf32>
    %73 = math.exp %72 : vector<16x16xf32>
    %cst_25 = arith.constant dense<0.000000e+00> : vector<16xf32>
    %74 = vector.multi_reduction <add>, %73, %cst_25 [1] : vector<16x16xf32> to vector<16xf32>
    %75 = vector.shape_cast %74 : vector<16xf32> to vector<16x1xf32>
    %76 = tpu.reciprocal %75 {approx = true} : vector<16x1xf32> -> vector<16x1xf32>
    %77 = arith.mulf %75, %76 : vector<16x1xf32>
    %cst_26 = arith.constant 2.000000e+00 : f32
    %78 = vector.broadcast %cst_26 : f32 to vector<16x1xf32>
    %79 = arith.subf %78, %77 : vector<16x1xf32>
    %80 = arith.mulf %76, %79 : vector<16x1xf32>
    %81 = vector.broadcast %80 : vector<16x1xf32> to vector<16x16xf32>
    %82 = arith.mulf %73, %81 : vector<16x16xf32>
    %cst_27 = arith.constant dense<0.000000e+00> : vector<16x8xf32>
    %83 = tpu.matmul %82, %66, %cst_27 {dimension_numbers = #tpu.dot_dimension_numbers<[1], [0], [0], [1], [0, 0, 1, 1], [], []>} : vector<16x16xf32>, vector<16x8xf32>, vector<16x8xf32> -> vector<16x8xf32>
    %84 = vector.extract_strided_slice %3 {offsets = [16, 0], sizes = [8, 128], strides = [1, 1]} : vector<40x128xf32> to vector<8x128xf32>
    %cst_28 = arith.constant dense<0.000000e+00> : vector<16x128xf32>
    %85 = tpu.matmul %83, %84, %cst_28 {dimension_numbers = #tpu.dot_dimension_numbers<[1], [0], [0], [1], [0, 0, 1, 1], [], []>} : vector<16x8xf32>, vector<8x128xf32>, vector<16x128xf32> -> vector<16x128xf32>
    %86 = arith.addf %63, %85 : vector<16x128xf32>
    %87 = vector.extract_strided_slice %9 {offsets = [0, 24], sizes = [16, 8], strides = [1, 1]} : vector<16x128xf32> to vector<16x8xf32>
    %88 = vector.extract_strided_slice %13 {offsets = [0, 56], sizes = [16, 8], strides = [1, 1]} : vector<16x128xf32> to vector<16x8xf32>
    %89 = vector.extract_strided_slice %13 {offsets = [0, 88], sizes = [16, 8], strides = [1, 1]} : vector<16x128xf32> to vector<16x8xf32>
    %cst_29 = arith.constant dense<0.000000e+00> : vector<16x16xf32>
    %90 = tpu.matmul %87, %88, %cst_29 {dimension_numbers = #tpu.dot_dimension_numbers<[1], [1], [0], [0], [0, 0, 1, 0], [], []>} : vector<16x8xf32>, vector<16x8xf32>, vector<16x16xf32> -> vector<16x16xf32>
    %91 = arith.addf %90, %14 : vector<16x16xf32>
    %cst_30 = arith.constant dense<0xFF800000> : vector<16xf32>
    %92 = vector.multi_reduction <maximumf>, %91, %cst_30 [1] : vector<16x16xf32> to vector<16xf32>
    %93 = vector.shape_cast %92 : vector<16xf32> to vector<16x1xf32>
    %94 = vector.broadcast %93 : vector<16x1xf32> to vector<16x16xf32>
    %95 = arith.subf %91, %94 : vector<16x16xf32>
    %96 = math.exp %95 : vector<16x16xf32>
    %cst_31 = arith.constant dense<0.000000e+00> : vector<16xf32>
    %97 = vector.multi_reduction <add>, %96, %cst_31 [1] : vector<16x16xf32> to vector<16xf32>
    %98 = vector.shape_cast %97 : vector<16xf32> to vector<16x1xf32>
    %99 = tpu.reciprocal %98 {approx = true} : vector<16x1xf32> -> vector<16x1xf32>
    %100 = arith.mulf %98, %99 : vector<16x1xf32>
    %cst_32 = arith.constant 2.000000e+00 : f32
    %101 = vector.broadcast %cst_32 : f32 to vector<16x1xf32>
    %102 = arith.subf %101, %100 : vector<16x1xf32>
    %103 = arith.mulf %99, %102 : vector<16x1xf32>
    %104 = vector.broadcast %103 : vector<16x1xf32> to vector<16x16xf32>
    %105 = arith.mulf %96, %104 : vector<16x16xf32>
    %cst_33 = arith.constant dense<0.000000e+00> : vector<16x8xf32>
    %106 = tpu.matmul %105, %89, %cst_33 {dimension_numbers = #tpu.dot_dimension_numbers<[1], [0], [0], [1], [0, 0, 1, 1], [], []>} : vector<16x16xf32>, vector<16x8xf32>, vector<16x8xf32> -> vector<16x8xf32>
    %107 = vector.extract_strided_slice %3 {offsets = [24, 0], sizes = [8, 128], strides = [1, 1]} : vector<40x128xf32> to vector<8x128xf32>
    %cst_34 = arith.constant dense<0.000000e+00> : vector<16x128xf32>
    %108 = tpu.matmul %106, %107, %cst_34 {dimension_numbers = #tpu.dot_dimension_numbers<[1], [0], [0], [1], [0, 0, 1, 1], [], []>} : vector<16x8xf32>, vector<8x128xf32>, vector<16x128xf32> -> vector<16x128xf32>
    %109 = arith.addf %86, %108 : vector<16x128xf32>
    %c0_35 = arith.constant 0 : index
    %c0_36 = arith.constant 0 : index
    %110 = vector.load %arg4[%c0_35, %c0_36] : memref<16x128xf32, #tpu.memory_space<vmem>>, vector<16x128xf32>
    tpu.vector_store %arg4[%c0_35, %c0_36], %109 {strides = array<i32>} : memref<16x128xf32, #tpu.memory_space<vmem>>, vector<16x128xf32>,
    return
  }
}

</mosaic_0001>

<llo_original>
// kernel: multi_head_attention.1
$region0: #{multi_head_attention.1}
  #allocation0 [shape = 'u32[]', space=smem, size = 0x4, offset = 0x4, fixed_abs, tag = 'smem constant byte address 0x4 - core index']
  #allocation1 [shape = 'u32[72,128]{1,0:T(1,128)}', space=vmem, size = 0x9000, scoped, tag = 'internal scratch']
  %s0 = inlined_call_operand.vmem [shape: f32[16,32], index: 0, kind: input, shape index: {}]
  %s1 = inlined_call_operand.vmem [shape: f32[16,32], index: 1, kind: input, shape index: {}]
  %s2 = inlined_call_operand.vmem [shape: f32[16,16], index: 2, kind: input, shape index: {}]
  %s3 = inlined_call_operand.hbm [shape: f32[2,40,128], index: 3, kind: input, shape index: {}]
  %s4 = inlined_call_operand.vmem [shape: f32[16,128], index: 4, kind: output, shape index: {}]
  %s5 = sld [smem:[#allocation0]]
  $region30: #{multi_head_attention.1} parent=0
    _
  %s7 = ssub.s32 1, %s5
  %s8 = scalar_select 0, %s7, %s5
  $region1: #{multi_head_attention.1} parent=0
    #allocation2 [shape = 'u8[40960]{0}', space=vmem, size = 0xa000, scoped, tag = 'input window, operand 3, single buffered']
    #allocation3 [shape = 's32[1]{0}', space=sflag, size = 0x4, scoped, tag = 'scoped memory for multi_head_attention.1']
    %9 = vsyncpa [#allocation3], 0
    // Predicated region
    $region2: #{multi_head_attention.1} parent=1 // pred_check
      _
    $region3: #{multi_head_attention.1} parent=1 // pred_check_branch
      %11 = sbr.rel (0) target = $region5
    $region4: #{multi_head_attention.1} parent=1 // pred_region
      _
    $region5: #{multi_head_attention.1} parent=1 // pred_fallthru
      _
    // Predicated region
    $region6: #{multi_head_attention.1} parent=1 // pred_check
      _
    $region7: #{multi_head_attention.1} parent=1 // pred_check_branch
      %13 = sbr.rel (0) target = $region9
    $region8: #{multi_head_attention.1} parent=1 // pred_region
      _
    $region9: #{multi_head_attention.1} parent=1 // pred_fallthru
      _
    // Predicated region
    $region10: #{multi_head_attention.1} parent=1 // pred_check
      _
    $region11: #{multi_head_attention.1} parent=1 // pred_check_branch
      %15 = sbr.rel (0) target = $region13
    $region12: #{multi_head_attention.1} parent=1 // pred_region
      _
    $region13: #{multi_head_attention.1} parent=1 // pred_fallthru
      _
    // Predicated region
    $region14: #{multi_head_attention.1} parent=1 // pred_check
      _
    $region15: #{multi_head_attention.1} parent=1 // pred_check_branch
      %17 = sbr.rel (0) target = $region17
    $region16: #{multi_head_attention.1} parent=1 // pred_region
      %19 = vsyncadd [#allocation3], 0
      %s20 = sshll.u32 %s3, 4
      %s21 = int_to_ptr.hbm [resolvable:$true] %s20
      %s22 = sshll.u32 [#allocation2], 4
      %s23 = int_to_ptr.vmem [resolvable:$true] %s22
      %28 = dma.hbm_to_vmem [thread:$0]  %s21, 1280, %s23, [#allocation3], 128, 128, 8
    $region17: #{multi_head_attention.1} parent=1 // pred_fallthru
      _
    // Predicated region
    $region18: #{multi_head_attention.1} parent=1 // pred_check
      _
    $region19: #{multi_head_attention.1} parent=1 // pred_check_branch
      %30 = sbr.rel (0) target = $region21
    $region20: #{multi_head_attention.1} parent=1 // pred_region
      %32 = dma.done [#allocation3], 1280
    $region21: #{multi_head_attention.1} parent=1 // pred_fallthru
      _
    %v33 = vld [vmem:[#allocation2] sm:$0xff]
    %v34 = vld [vmem:[#allocation2 + $0x8] sm:$0xff]
    %v35 = vld [vmem:[#allocation2 + $0x10] sm:$0xff]
    %v36 = vld [vmem:[#allocation2 + $0x18] sm:$0xff]
    %v37 = vld [vmem:[#allocation2 + $0x20] sm:$0xff]
    %s38 = scalar_lea.vmem [#allocation2], 40
    %v39 = vld [vmem:[%s38] sm:$0xff]
    %v40 = vld [vmem:[%s38 + $0x8] sm:$0xff]
    %v41 = vld [vmem:[%s38 + $0x10] sm:$0xff]
    %v42 = vld [vmem:[%s38 + $0x18] sm:$0xff]
    %v43 = vld [vmem:[%s38 + $0x20] sm:$0xff]
    %v44 = vld [vmem:[%s0] sm:$0xff]
    %v45 = vld [vmem:[%s0 + $0x8] sm:$0xff]
    %v46 = vperm.slane %v37, 0
    %vm47 = vcmask 261120
    %v49 = vsel %vm47, %v44, 0
    %v52 = vsel %vm47, %v45, 0
    %54 = vmatpush.msra.mxu0 0.0
    %55 = vmatpush.msra.mxu0 0.0
    %56 = vmatpush.msra.mxu0 0.0
    %57 = vmatpush.msra.mxu0 0.0
    %58 = vmatpush.msra.mxu0 0.0
    %59 = vmatpush.msra.mxu0 0.0
    %60 = vmatpush.msra.mxu0 0.0
    %61 = vmatpush.msra.mxu0 0.0
    %62 = vmatpush.msra.mxu0 0.0
    %63 = vmatpush.msra.mxu0 0.0
    %64 = vmatpush.msra.mxu0 0.0
    %65 = vmatpush.msra.mxu0 0.0
    %66 = vmatpush.msra.mxu0 %v36
    %67 = vmatpush.msra.mxu0 %v35
    %68 = vmatpush.msra.mxu0 %v34
    %69 = vmatpush.msra.mxu0 %v33
    %70 = vmatmul.f32.gmra.mxu0 %v49
    %v71 = vpop.f32.mrf.mxu0
    %v72 = vadd.f32 %v46, %v71
    %73 = vmatmul.f32.gmra.mxu0 %v52
    %v74 = vpop.f32.mrf.mxu0
    %v75 = vadd.f32 %v46, %v74
    %76 = vdwg.mxu0
    %v77 = vld [vmem:[%s1] sm:$0xff]
    %v78 = vld [vmem:[%s1 + $0x8] sm:$0xff]
    %v80 = vsel %vm47, %v77, 0
    %v83 = vsel %vm47, %v78, 0
    %85 = vmatpush.msra.mxu0 0.0
    %86 = vmatpush.msra.mxu0 0.0
    %87 = vmatpush.msra.mxu0 0.0
    %88 = vmatpush.msra.mxu0 0.0
    %89 = vmatpush.msra.mxu0 0.0
    %90 = vmatpush.msra.mxu0 0.0
    %91 = vmatpush.msra.mxu0 0.0
    %92 = vmatpush.msra.mxu0 0.0
    %93 = vmatpush.msra.mxu0 0.0
    %94 = vmatpush.msra.mxu0 0.0
    %95 = vmatpush.msra.mxu0 0.0
    %96 = vmatpush.msra.mxu0 0.0
    %97 = vmatpush.msra.mxu0 %v36
    %98 = vmatpush.msra.mxu0 %v35
    %99 = vmatpush.msra.mxu0 %v34
    %100 = vmatpush.msra.mxu0 %v33
    %101 = vmatmul.f32.gmra.mxu0 %v80
    %v102 = vpop.f32.mrf.mxu0
    %v103 = vadd.f32 %v46, %v102
    %104 = vmatmul.f32.gmra.mxu0 %v83
    %v105 = vpop.f32.mrf.mxu0
    %v106 = vadd.f32 %v46, %v105
    %107 = vdwg.mxu0
    %v108 = vld [vmem:[%s2] sm:$0xff]
    %v109 = vld [vmem:[%s2 + $0x8] sm:$0xff]
    %v110 = vperm.slane %v43, 0
    %113 = vrot.lane.b32.xlu0 %v103, 96
    %v114 = vpop.permute.xlu0 %113
    %115 = vrot.lane.b32.xlu0 %v106, 96
    %v116 = vpop.permute.xlu0 %115
    %vm117 = vcmask 64512
    %v119 = vsel %vm117, %v72, 0
    %v122 = vsel %vm117, %v75, 0
    %v124 = vsel %vm117, %v114, 0
    %v126 = vsel %vm117, %v116, 0
    %128 = vmatpush.xpose.msra.mxu0 0.0
    %129 = vmatpush.xpose.msra.mxu0 0.0
    %130 = vmatpush.xpose.msra.mxu0 0.0
    %131 = vmatpush.xpose.msra.mxu0 0.0
    %132 = vmatpush.xpose.msra.mxu0 0.0
    %133 = vmatpush.xpose.msra.mxu0 0.0
    %134 = vmatpush.xpose.msra.mxu0 0.0
    %135 = vmatpush.xpose.msra.mxu0 0.0
    %136 = vmatpush.xpose.msra.mxu0 0.0
    %137 = vmatpush.xpose.msra.mxu0 0.0
    %138 = vmatpush.xpose.msra.mxu0 0.0
    %139 = vmatpush.xpose.msra.mxu0 0.0
    %140 = vmatpush.xpose.msra.mxu0 0.0
    %141 = vmatpush.xpose.msra.mxu0 0.0
    %142 = vmatpush.xpose.msra.mxu0 %v126
    %143 = vmatpush.xpose.msra.mxu0 %v124
    %144 = vmatmul.f32.gmra.mxu0 %v119
    %v145 = vpop.f32.mrf.mxu0
    %v146 = vadd.f32 %v108, %v145
    %147 = vmatmul.f32.gmra.mxu0 %v122
    %v148 = vpop.f32.mrf.mxu0
    %v149 = vadd.f32 %v109, %v148
    %150 = vdwg.mxu0
    %vm151 = vcmask 130048
    %v152 = vsel %vm151, %v146, -inf
    %153 = vmax.xlane.f32.xlu0 %v152
    %v154 = vpop.xlane.xlu0 %153
    %v155 = vsel %vm151, %v149, -inf
    %156 = vmax.xlane.f32.xlu0 %v155
    %v157 = vpop.xlane.xlu0 %156
    %v158 = vsub.f32 %v146, %v154
    %v159 = vsub.f32 %v149, %v157
    %v160 = vmul.f32 %v158, 1.442695
    %v161 = vpow.pop %v160
    %v162 = vmul.f32 %v159, 1.442695
    %v163 = vpow.pop %v162
    %v164 = vsel %vm151, %v161, 0.0
    %165 = vadd.xlane.f32.xlu0 %v164
    %v166 = vpop.xlane.xlu0 %165
    %v167 = vsel %vm151, %v163, 0.0
    %168 = vadd.xlane.f32.xlu0 %v167
    %v169 = vpop.xlane.xlu0 %168
    %v170 = vrcp.pop %v166
    %v171 = vrcp.pop %v169
    %v172 = vmul.f32 %v166, %v170
    %v173 = vmul.f32 %v169, %v171
    %v174 = vsub.f32 2.0, %v172
    %v175 = vsub.f32 2.0, %v173
    %v176 = vmul.f32 %v170, %v174
    %v177 = vmul.f32 %v171, %v175
    %v178 = vmul.f32 %v161, %v176
    %v179 = vmul.f32 %v163, %v177
    %180 = vrot.lane.b32.xlu0 %v103, 64
    %v181 = vpop.permute.xlu0 %180
    %182 = vrot.lane.b32.xlu0 %v106, 64
    %v183 = vpop.permute.xlu0 %182
    %v187 = vsel %vm151, %v178, 0
    %v190 = vsel %vm151, %v179, 0
    %192 = vmatpush.msra.mxu0 0.0
    %193 = vmatpush.msra.mxu0 0.0
    %194 = vmatpush.msra.mxu0 0.0
    %195 = vmatpush.msra.mxu0 0.0
    %196 = vmatpush.msra.mxu0 0.0
    %197 = vmatpush.msra.mxu0 0.0
    %198 = vmatpush.msra.mxu0 0.0
    %199 = vmatpush.msra.mxu0 0.0
    %200 = vmatpush.msra.mxu0 0.0
    %201 = vmatpush.msra.mxu0 0.0
    %202 = vmatpush.msra.mxu0 0.0
    %203 = vmatpush.msra.mxu0 0.0
    %204 = vmatpush.msra.mxu0 0.0
    %205 = vmatpush.msra.mxu0 0.0
    %206 = vmatpush.msra.mxu0 %v183
    %207 = vmatpush.msra.mxu0 %v181
    %208 = vmatmul.f32.gmra.mxu0 %v187
    %v209 = vpop.f32.mrf.mxu0
    %v210 = vadd.f32 0.0, %v209
    %211 = vmatmul.f32.gmra.mxu0 %v190
    %v212 = vpop.f32.mrf.mxu0
    %v213 = vadd.f32 0.0, %v212
    %214 = vdwg.mxu0
    %v216 = vsel %vm117, %v210, 0
    %v219 = vsel %vm117, %v213, 0
    %221 = vmatpush.msra.mxu0 0.0
    %222 = vmatpush.msra.mxu0 0.0
    %223 = vmatpush.msra.mxu0 0.0
    %224 = vmatpush.msra.mxu0 0.0
    %225 = vmatpush.msra.mxu0 0.0
    %226 = vmatpush.msra.mxu0 0.0
    %227 = vmatpush.msra.mxu0 0.0
    %228 = vmatpush.msra.mxu0 0.0
    %229 = vmatpush.msra.mxu0 0.0
    %230 = vmatpush.msra.mxu0 0.0
    %231 = vmatpush.msra.mxu0 0.0
    %232 = vmatpush.msra.mxu0 0.0
    %233 = vmatpush.msra.mxu0 0.0
    %234 = vmatpush.msra.mxu0 0.0
    %235 = vmatpush.msra.mxu0 0.0
    %236 = vmatpush.msra.mxu0 %v39
    %237 = vmatmul.f32.gmra.mxu0 %v216
    %v238 = vpop.f32.mrf.mxu0
    %v239 = vadd.f32 0.0, %v238
    %240 = vmatmul.f32.gmra.mxu0 %v219
    %v241 = vpop.f32.mrf.mxu0
    %v242 = vadd.f32 0.0, %v241
    %243 = vdwg.mxu0
    %v244 = vadd.f32 %v110, %v239
    %v245 = vadd.f32 %v110, %v242
    %246 = vrot.lane.b32.xlu0 %v72, 120
    %v247 = vpop.permute.xlu0 %246
    %248 = vrot.lane.b32.xlu0 %v75, 120
    %v249 = vpop.permute.xlu0 %248
    %250 = vrot.lane.b32.xlu0 %v103, 88
    %v251 = vpop.permute.xlu0 %250
    %252 = vrot.lane.b32.xlu0 %v106, 88
    %v253 = vpop.permute.xlu0 %252
    %v254 = vsel %vm117, %v247, 0
    %v256 = vsel %vm117, %v249, 0
    %v258 = vsel %vm117, %v251, 0
    %v260 = vsel %vm117, %v253, 0
    %262 = vmatpush.xpose.msra.mxu0 0.0
    %263 = vmatpush.xpose.msra.mxu0 0.0
    %264 = vmatpush.xpose.msra.mxu0 0.0
    %265 = vmatpush.xpose.msra.mxu0 0.0
    %266 = vmatpush.xpose.msra.mxu0 0.0
    %267 = vmatpush.xpose.msra.mxu0 0.0
    %268 = vmatpush.xpose.msra.mxu0 0.0
    %269 = vmatpush.xpose.msra.mxu0 0.0
    %270 = vmatpush.xpose.msra.mxu0 0.0
    %271 = vmatpush.xpose.msra.mxu0 0.0
    %272 = vmatpush.xpose.msra.mxu0 0.0
    %273 = vmatpush.xpose.msra.mxu0 0.0
    %274 = vmatpush.xpose.msra.mxu0 0.0
    %275 = vmatpush.xpose.msra.mxu0 0.0
    %276 = vmatpush.xpose.msra.mxu0 %v260
    %277 = vmatpush.xpose.msra.mxu0 %v258
    %278 = vmatmul.f32.gmra.mxu0 %v254
    %v279 = vpop.f32.mrf.mxu0
    %v280 = vadd.f32 %v108, %v279
    %281 = vmatmul.f32.gmra.mxu0 %v256
    %v282 = vpop.f32.mrf.mxu0
    %v283 = vadd.f32 %v109, %v282
    %284 = vdwg.mxu0
    %v285 = vsel %vm151, %v280, -inf
    %286 = vmax.xlane.f32.xlu0 %v285
    %v287 = vpop.xlane.xlu0 %286
    %v288 = vsel %vm151, %v283, -inf
    %289 = vmax.xlane.f32.xlu0 %v288
    %v290 = vpop.xlane.xlu0 %289
    %v291 = vsub.f32 %v280, %v287
    %v292 = vsub.f32 %v283, %v290
    %v293 = vmul.f32 %v291, 1.442695
    %v294 = vpow.pop %v293
    %v295 = vmul.f32 %v292, 1.442695
    %v296 = vpow.pop %v295
    %v297 = vsel %vm151, %v294, 0.0
    %298 = vadd.xlane.f32.xlu0 %v297
    %v299 = vpop.xlane.xlu0 %298
    %v300 = vsel %vm151, %v296, 0.0
    %301 = vadd.xlane.f32.xlu0 %v300
    %v302 = vpop.xlane.xlu0 %301
    %v303 = vrcp.pop %v299
    %v304 = vrcp.pop %v302
    %v305 = vmul.f32 %v299, %v303
    %v306 = vmul.f32 %v302, %v304
    %v307 = vsub.f32 2.0, %v305
    %v308 = vsub.f32 2.0, %v306
    %v309 = vmul.f32 %v303, %v307
    %v310 = vmul.f32 %v304, %v308
    %v311 = vmul.f32 %v294, %v309
    %v312 = vmul.f32 %v296, %v310
    %313 = vrot.lane.b32.xlu0 %v103, 56
    %v314 = vpop.permute.xlu0 %313
    %315 = vrot.lane.b32.xlu0 %v106, 56
    %v316 = vpop.permute.xlu0 %315
    %v320 = vsel %vm151, %v311, 0
    %v323 = vsel %vm151, %v312, 0
    %325 = vmatpush.msra.mxu0 0.0
    %326 = vmatpush.msra.mxu0 0.0
    %327 = vmatpush.msra.mxu0 0.0
    %328 = vmatpush.msra.mxu0 0.0
    %329 = vmatpush.msra.mxu0 0.0
    %330 = vmatpush.msra.mxu0 0.0
    %331 = vmatpush.msra.mxu0 0.0
    %332 = vmatpush.msra.mxu0 0.0
    %333 = vmatpush.msra.mxu0 0.0
    %334 = vmatpush.msra.mxu0 0.0
    %335 = vmatpush.msra.mxu0 0.0
    %336 = vmatpush.msra.mxu0 0.0
    %337 = vmatpush.msra.mxu0 0.0
    %338 = vmatpush.msra.mxu0 0.0
    %339 = vmatpush.msra.mxu0 %v316
    %340 = vmatpush.msra.mxu0 %v314
    %341 = vmatmul.f32.gmra.mxu0 %v320
    %v342 = vpop.f32.mrf.mxu0
    %v343 = vadd.f32 0.0, %v342
    %344 = vmatmul.f32.gmra.mxu0 %v323
    %v345 = vpop.f32.mrf.mxu0
    %v346 = vadd.f32 0.0, %v345
    %347 = vdwg.mxu0
    %v349 = vsel %vm117, %v343, 0
    %v352 = vsel %vm117, %v346, 0
    %354 = vmatpush.msra.mxu0 0.0
    %355 = vmatpush.msra.mxu0 0.0
    %356 = vmatpush.msra.mxu0 0.0
    %357 = vmatpush.msra.mxu0 0.0
    %358 = vmatpush.msra.mxu0 0.0
    %359 = vmatpush.msra.mxu0 0.0
    %360 = vmatpush.msra.mxu0 0.0
    %361 = vmatpush.msra.mxu0 0.0
    %362 = vmatpush.msra.mxu0 0.0
    %363 = vmatpush.msra.mxu0 0.0
    %364 = vmatpush.msra.mxu0 0.0
    %365 = vmatpush.msra.mxu0 0.0
    %366 = vmatpush.msra.mxu0 0.0
    %367 = vmatpush.msra.mxu0 0.0
    %368 = vmatpush.msra.mxu0 0.0
    %369 = vmatpush.msra.mxu0 %v40
    %370 = vmatmul.f32.gmra.mxu0 %v349
    %v371 = vpop.f32.mrf.mxu0
    %v372 = vadd.f32 0.0, %v371
    %373 = vmatmul.f32.gmra.mxu0 %v352
    %v374 = vpop.f32.mrf.mxu0
    %v375 = vadd.f32 0.0, %v374
    %376 = vdwg.mxu0
    %v377 = vadd.f32 %v244, %v372
    %v378 = vadd.f32 %v245, %v375
    %379 = vrot.lane.b32.xlu0 %v72, 112
    %v380 = vpop.permute.xlu0 %379
    %381 = vrot.lane.b32.xlu0 %v75, 112
    %v382 = vpop.permute.xlu0 %381
    %383 = vrot.lane.b32.xlu0 %v103, 80
    %v384 = vpop.permute.xlu0 %383
    %385 = vrot.lane.b32.xlu0 %v106, 80
    %v386 = vpop.permute.xlu0 %385
    %v387 = vsel %vm117, %v380, 0
    %v389 = vsel %vm117, %v382, 0
    %v391 = vsel %vm117, %v384, 0
    %v393 = vsel %vm117, %v386, 0
    %395 = vmatpush.xpose.msra.mxu0 0.0
    %396 = vmatpush.xpose.msra.mxu0 0.0
    %397 = vmatpush.xpose.msra.mxu0 0.0
    %398 = vmatpush.xpose.msra.mxu0 0.0
    %399 = vmatpush.xpose.msra.mxu0 0.0
    %400 = vmatpush.xpose.msra.mxu0 0.0
    %401 = vmatpush.xpose.msra.mxu0 0.0
    %402 = vmatpush.xpose.msra.mxu0 0.0
    %403 = vmatpush.xpose.msra.mxu0 0.0
    %404 = vmatpush.xpose.msra.mxu0 0.0
    %405 = vmatpush.xpose.msra.mxu0 0.0
    %406 = vmatpush.xpose.msra.mxu0 0.0
    %407 = vmatpush.xpose.msra.mxu0 0.0
    %408 = vmatpush.xpose.msra.mxu0 0.0
    %409 = vmatpush.xpose.msra.mxu0 %v393
    %410 = vmatpush.xpose.msra.mxu0 %v391
    %411 = vmatmul.f32.gmra.mxu0 %v387
    %v412 = vpop.f32.mrf.mxu0
    %v413 = vadd.f32 %v108, %v412
    %414 = vmatmul.f32.gmra.mxu0 %v389
    %v415 = vpop.f32.mrf.mxu0
    %v416 = vadd.f32 %v109, %v415
    %417 = vdwg.mxu0
    %v418 = vsel %vm151, %v413, -inf
    %419 = vmax.xlane.f32.xlu0 %v418
    %v420 = vpop.xlane.xlu0 %419
    %v421 = vsel %vm151, %v416, -inf
    %422 = vmax.xlane.f32.xlu0 %v421
    %v423 = vpop.xlane.xlu0 %422
    %v424 = vsub.f32 %v413, %v420
    %v425 = vsub.f32 %v416, %v423
    %v426 = vmul.f32 %v424, 1.442695
    %v427 = vpow.pop %v426
    %v428 = vmul.f32 %v425, 1.442695
    %v429 = vpow.pop %v428
    %v430 = vsel %vm151, %v427, 0.0
    %431 = vadd.xlane.f32.xlu0 %v430
    %v432 = vpop.xlane.xlu0 %431
    %v433 = vsel %vm151, %v429, 0.0
    %434 = vadd.xlane.f32.xlu0 %v433
    %v435 = vpop.xlane.xlu0 %434
    %v436 = vrcp.pop %v432
    %v437 = vrcp.pop %v435
    %v438 = vmul.f32 %v432, %v436
    %v439 = vmul.f32 %v435, %v437
    %v440 = vsub.f32 2.0, %v438
    %v441 = vsub.f32 2.0, %v439
    %v442 = vmul.f32 %v436, %v440
    %v443 = vmul.f32 %v437, %v441
    %v444 = vmul.f32 %v427, %v442
    %v445 = vmul.f32 %v429, %v443
    %446 = vrot.lane.b32.xlu0 %v103, 48
    %v447 = vpop.permute.xlu0 %446
    %448 = vrot.lane.b32.xlu0 %v106, 48
    %v449 = vpop.permute.xlu0 %448
    %v453 = vsel %vm151, %v444, 0
    %v456 = vsel %vm151, %v445, 0
    %458 = vmatpush.msra.mxu0 0.0
    %459 = vmatpush.msra.mxu0 0.0
    %460 = vmatpush.msra.mxu0 0.0
    %461 = vmatpush.msra.mxu0 0.0
    %462 = vmatpush.msra.mxu0 0.0
    %463 = vmatpush.msra.mxu0 0.0
    %464 = vmatpush.msra.mxu0 0.0
    %465 = vmatpush.msra.mxu0 0.0
    %466 = vmatpush.msra.mxu0 0.0
    %467 = vmatpush.msra.mxu0 0.0
    %468 = vmatpush.msra.mxu0 0.0
    %469 = vmatpush.msra.mxu0 0.0
    %470 = vmatpush.msra.mxu0 0.0
    %471 = vmatpush.msra.mxu0 0.0
    %472 = vmatpush.msra.mxu0 %v449
    %473 = vmatpush.msra.mxu0 %v447
    %474 = vmatmul.f32.gmra.mxu0 %v453
    %v475 = vpop.f32.mrf.mxu0
    %v476 = vadd.f32 0.0, %v475
    %477 = vmatmul.f32.gmra.mxu0 %v456
    %v478 = vpop.f32.mrf.mxu0
    %v479 = vadd.f32 0.0, %v478
    %480 = vdwg.mxu0
    %v482 = vsel %vm117, %v476, 0
    %v485 = vsel %vm117, %v479, 0
    %487 = vmatpush.msra.mxu0 0.0
    %488 = vmatpush.msra.mxu0 0.0
    %489 = vmatpush.msra.mxu0 0.0
    %490 = vmatpush.msra.mxu0 0.0
    %491 = vmatpush.msra.mxu0 0.0
    %492 = vmatpush.msra.mxu0 0.0
    %493 = vmatpush.msra.mxu0 0.0
    %494 = vmatpush.msra.mxu0 0.0
    %495 = vmatpush.msra.mxu0 0.0
    %496 = vmatpush.msra.mxu0 0.0
    %497 = vmatpush.msra.mxu0 0.0
    %498 = vmatpush.msra.mxu0 0.0
    %499 = vmatpush.msra.mxu0 0.0
    %500 = vmatpush.msra.mxu0 0.0
    %501 = vmatpush.msra.mxu0 0.0
    %502 = vmatpush.msra.mxu0 %v41
    %503 = vmatmul.f32.gmra.mxu0 %v482
    %v504 = vpop.f32.mrf.mxu0
    %v505 = vadd.f32 0.0, %v504
    %506 = vmatmul.f32.gmra.mxu0 %v485
    %v507 = vpop.f32.mrf.mxu0
    %v508 = vadd.f32 0.0, %v507
    %509 = vdwg.mxu0
    %v510 = vadd.f32 %v377, %v505
    %v511 = vadd.f32 %v378, %v508
    %512 = vrot.lane.b32.xlu0 %v72, 104
    %v513 = vpop.permute.xlu0 %512
    %514 = vrot.lane.b32.xlu0 %v75, 104
    %v515 = vpop.permute.xlu0 %514
    %516 = vrot.lane.b32.xlu0 %v103, 72
    %v517 = vpop.permute.xlu0 %516
    %518 = vrot.lane.b32.xlu0 %v106, 72
    %v519 = vpop.permute.xlu0 %518
    %v520 = vsel %vm117, %v513, 0
    %v522 = vsel %vm117, %v515, 0
    %v524 = vsel %vm117, %v517, 0
    %v526 = vsel %vm117, %v519, 0
    %528 = vmatpush.xpose.msra.mxu0 0.0
    %529 = vmatpush.xpose.msra.mxu0 0.0
    %530 = vmatpush.xpose.msra.mxu0 0.0
    %531 = vmatpush.xpose.msra.mxu0 0.0
    %532 = vmatpush.xpose.msra.mxu0 0.0
    %533 = vmatpush.xpose.msra.mxu0 0.0
    %534 = vmatpush.xpose.msra.mxu0 0.0
    %535 = vmatpush.xpose.msra.mxu0 0.0
    %536 = vmatpush.xpose.msra.mxu0 0.0
    %537 = vmatpush.xpose.msra.mxu0 0.0
    %538 = vmatpush.xpose.msra.mxu0 0.0
    %539 = vmatpush.xpose.msra.mxu0 0.0
    %540 = vmatpush.xpose.msra.mxu0 0.0
    %541 = vmatpush.xpose.msra.mxu0 0.0
    %542 = vmatpush.xpose.msra.mxu0 %v526
    %543 = vmatpush.xpose.msra.mxu0 %v524
    %544 = vmatmul.f32.gmra.mxu0 %v520
    %v545 = vpop.f32.mrf.mxu0
    %v546 = vadd.f32 %v108, %v545
    %547 = vmatmul.f32.gmra.mxu0 %v522
    %v548 = vpop.f32.mrf.mxu0
    %v549 = vadd.f32 %v109, %v548
    %550 = vdwg.mxu0
    %v551 = vsel %vm151, %v546, -inf
    %552 = vmax.xlane.f32.xlu0 %v551
    %v553 = vpop.xlane.xlu0 %552
    %v554 = vsel %vm151, %v549, -inf
    %555 = vmax.xlane.f32.xlu0 %v554
    %v556 = vpop.xlane.xlu0 %555
    %v557 = vsub.f32 %v546, %v553
    %v558 = vsub.f32 %v549, %v556
    %v559 = vmul.f32 %v557, 1.442695
    %v560 = vpow.pop %v559
    %v561 = vmul.f32 %v558, 1.442695
    %v562 = vpow.pop %v561
    %v563 = vsel %vm151, %v560, 0.0
    %564 = vadd.xlane.f32.xlu0 %v563
    %v565 = vpop.xlane.xlu0 %564
    %v566 = vsel %vm151, %v562, 0.0
    %567 = vadd.xlane.f32.xlu0 %v566
    %v568 = vpop.xlane.xlu0 %567
    %v569 = vrcp.pop %v565
    %v570 = vrcp.pop %v568
    %v571 = vmul.f32 %v565, %v569
    %v572 = vmul.f32 %v568, %v570
    %v573 = vsub.f32 2.0, %v571
    %v574 = vsub.f32 2.0, %v572
    %v575 = vmul.f32 %v569, %v573
    %v576 = vmul.f32 %v570, %v574
    %v577 = vmul.f32 %v560, %v575
    %v578 = vmul.f32 %v562, %v576
    %579 = vrot.lane.b32.xlu0 %v103, 40
    %v580 = vpop.permute.xlu0 %579
    %581 = vrot.lane.b32.xlu0 %v106, 40
    %v582 = vpop.permute.xlu0 %581
    %v586 = vsel %vm151, %v577, 0
    %v589 = vsel %vm151, %v578, 0
    %591 = vmatpush.msra.mxu0 0.0
    %592 = vmatpush.msra.mxu0 0.0
    %593 = vmatpush.msra.mxu0 0.0
    %594 = vmatpush.msra.mxu0 0.0
    %595 = vmatpush.msra.mxu0 0.0
    %596 = vmatpush.msra.mxu0 0.0
    %597 = vmatpush.msra.mxu0 0.0
    %598 = vmatpush.msra.mxu0 0.0
    %599 = vmatpush.msra.mxu0 0.0
    %600 = vmatpush.msra.mxu0 0.0
    %601 = vmatpush.msra.mxu0 0.0
    %602 = vmatpush.msra.mxu0 0.0
    %603 = vmatpush.msra.mxu0 0.0
    %604 = vmatpush.msra.mxu0 0.0
    %605 = vmatpush.msra.mxu0 %v582
    %606 = vmatpush.msra.mxu0 %v580
    %607 = vmatmul.f32.gmra.mxu0 %v586
    %v608 = vpop.f32.mrf.mxu0
    %v609 = vadd.f32 0.0, %v608
    %610 = vmatmul.f32.gmra.mxu0 %v589
    %v611 = vpop.f32.mrf.mxu0
    %v612 = vadd.f32 0.0, %v611
    %613 = vdwg.mxu0
    %v615 = vsel %vm117, %v609, 0
    %v618 = vsel %vm117, %v612, 0
    %620 = vmatpush.msra.mxu0 0.0
    %621 = vmatpush.msra.mxu0 0.0
    %622 = vmatpush.msra.mxu0 0.0
    %623 = vmatpush.msra.mxu0 0.0
    %624 = vmatpush.msra.mxu0 0.0
    %625 = vmatpush.msra.mxu0 0.0
    %626 = vmatpush.msra.mxu0 0.0
    %627 = vmatpush.msra.mxu0 0.0
    %628 = vmatpush.msra.mxu0 0.0
    %629 = vmatpush.msra.mxu0 0.0
    %630 = vmatpush.msra.mxu0 0.0
    %631 = vmatpush.msra.mxu0 0.0
    %632 = vmatpush.msra.mxu0 0.0
    %633 = vmatpush.msra.mxu0 0.0
    %634 = vmatpush.msra.mxu0 0.0
    %635 = vmatpush.msra.mxu0 %v42
    %636 = vmatmul.f32.gmra.mxu0 %v615
    %v637 = vpop.f32.mrf.mxu0
    %v638 = vadd.f32 0.0, %v637
    %639 = vmatmul.f32.gmra.mxu0 %v618
    %v640 = vpop.f32.mrf.mxu0
    %v641 = vadd.f32 0.0, %v640
    %642 = vdwg.mxu0
    %v643 = vadd.f32 %v510, %v638
    %v644 = vadd.f32 %v511, %v641
    %645 = vst [vmem:[%s4] sm:$0xff] %v643
    %646 = vst [vmem:[%s4 + $0x8] sm:$0xff] %v644
    // Predicated region
    $region22: #{multi_head_attention.1} parent=1 // pred_check
      _
    $region23: #{multi_head_attention.1} parent=1 // pred_check_branch
      %648 = sbr.rel (0) target = $region25
    $region24: #{multi_head_attention.1} parent=1 // pred_region
      _
    $region25: #{multi_head_attention.1} parent=1 // pred_fallthru
      _
    // Predicated region
    $region26: #{multi_head_attention.1} parent=1 // pred_check
      _
    $region27: #{multi_head_attention.1} parent=1 // pred_check_branch
      %650 = sbr.rel (0) target = $region29
    $region28: #{multi_head_attention.1} parent=1 // pred_region
      _
    $region29: #{multi_head_attention.1} parent=1 // pred_fallthru
      _
    %651 = vsyncpa [#allocation3], 1

</llo_original>
